<compile_context>
chip_gen: v6e
topology: v6e:2x2x1
jax: 0.10.0
libtpu: 0.0.40
codegen_flags: <defaults>
</compile_context>

<pallas_src>
import jax
import jax.numpy as jnp
from jax.experimental import pallas as pl
from jax.experimental.pallas import tpu as pltpu

IN_DIM = 28 * 28   # 784
H1 = 128
H2 = 64
OUT = 10
H2_PAD = 128       # pad hidden 64 -> 128 (full-lane vregs, full MXU N)
OUT_PAD = 128      # pad output 10 -> 128 (lane-dense, unmasked vst)


def _round_up(x, m):
    return ((x + m - 1) // m) * m


def _cdiv(a, b):
    return -(-a // b)


def _mlp_kernel(x_ref, w1_ref, b1_ref, w2_ref, b2_ref, w3_ref, b3_ref, o_ref):
    # x: (TB, 784) f32; w1/b1: f32; w2/w3: bf16 (padded); b2/b3: f32 (padded);
    # out: (TB, 128) bf16 (cols 10: are zero).
    x = x_ref[...]
    # fc1 in full f32 (kernel is HBM-bound; extra MXU passes are free).
    h1 = jnp.dot(x, w1_ref[...], preferred_element_type=jnp.float32) + b1_ref[...]
    h1 = jnp.maximum(h1, 0.0)                                   # relu(fc1)
    h2 = jnp.dot(h1.astype(jnp.bfloat16), w2_ref[...],
                 preferred_element_type=jnp.float32) + b2_ref[...]
    h2 = jnp.maximum(h2, 0.0)                                   # relu(fc2)
    o_ref[...] = (jnp.dot(h2.astype(jnp.bfloat16), w3_ref[...],
                          preferred_element_type=jnp.float32)
                  + b3_ref[...]).astype(o_ref.dtype)            # fc3 (no activation)


def prepare_params(params):
    """One-time padding/casting of weights (hoisted out of the per-call path).

    params: (w1, b1, w2, b2, w3, b3) with (in, out)-layout weights (PyTorch weight.T).
    """
    w1, b1, w2, b2, w3, b3 = params
    w1f = w1.astype(jnp.float32)
    b1f = b1.reshape(1, H1).astype(jnp.float32)
    w2b = jnp.zeros((H1, H2_PAD), jnp.bfloat16).at[:, :H2].set(w2.astype(jnp.bfloat16))
    b2f = jnp.zeros((1, H2_PAD), jnp.float32).at[:, :H2].set(
        b2.reshape(1, H2).astype(jnp.float32))
    w3b = jnp.zeros((H2_PAD, OUT_PAD), jnp.bfloat16).at[:H2, :OUT].set(
        w3.astype(jnp.bfloat16))
    b3f = jnp.zeros((1, OUT_PAD), jnp.float32).at[:, :OUT].set(
        b3.reshape(1, OUT).astype(jnp.float32))
    return (w1f, b1f, w2b, b2f, w3b, b3f)


def _pick_tile(B, tb_max):
    """Batch tile: multiple of 16, large for HBM roofline, >=2 grid steps when
    possible (v7x dual-TC sharding), and <~10% padding waste."""
    tb = min(tb_max, _round_up(B, 16))
    if B > 16:
        tb = min(tb, _round_up(_cdiv(B, 2), 16))   # at least 2 grid steps
    while tb > 16 and (_round_up(B, tb) - B) * 10 > B:   # cap padding waste ~10%
        tb = max(16, _round_up(tb // 2, 16))
    return tb


def simple_nn_forward(x, prepared_params, *, tb=1024):
    """x: (B, 1, 28, 28) float32 (NCHW). Returns logits (B, 10) float32."""
    w1f, b1f, w2b, b2f, w3b, b3f = prepared_params
    B = x.shape[0]
    x_flat = x.reshape(B, IN_DIM).astype(jnp.float32)   # nn.Flatten(); streamed as f32

    tb = _pick_tile(B, tb)
    b_pad = _round_up(B, tb)
    if b_pad != B:
        x_flat = jnp.pad(x_flat, ((0, b_pad - B), (0, 0)))

    grid = (b_pad // tb,)
    resident = lambda shape: pl.BlockSpec(shape, lambda i: (0, 0))  # stays in VMEM

    flops = 2 * b_pad * (IN_DIM * H1 + H1 * H2_PAD + H2_PAD * OUT_PAD)
    bytes_accessed = (b_pad * (IN_DIM * 4 + OUT_PAD * 2)          # x in + logits out
                      + IN_DIM * H1 * 4 + H1 * H2_PAD * 2 + H2_PAD * OUT_PAD * 2
                      + (H1 + H2_PAD + OUT_PAD) * 4)              # weights + biases

    out_padded = pl.pallas_call(
        _mlp_kernel,
        out_shape=jax.ShapeDtypeStruct((b_pad, OUT_PAD), jnp.bfloat16),
        grid=grid,
        in_specs=[
            pl.BlockSpec((tb, IN_DIM), lambda i: (i, 0)),   # streamed batch tiles (f32)
            resident((IN_DIM, H1)), resident((1, H1)),
            resident((H1, H2_PAD)), resident((1, H2_PAD)),
            resident((H2_PAD, OUT_PAD)), resident((1, OUT_PAD)),
        ],
        out_specs=pl.BlockSpec((tb, OUT_PAD), lambda i: (i, 0)),
        compiler_params=pltpu.CompilerParams(
            dimension_semantics=("parallel",)),
        cost_estimate=pl.CostEstimate(flops=flops, transcendentals=0,
                                      bytes_accessed=bytes_accessed),
    )(x_flat, w1f, b1f, w2b, b2f, w3b, b3f)

    return out_padded[:B, :OUT].astype(jnp.float32)


def init_params(key):
    """Deterministic init matching PyTorch nn.Linear default (U(-1/sqrt(fan_in), +))."""
    dims = [(IN_DIM, H1), (H1, H2), (H2, OUT)]
    params = []
    for i, (fan_in, fan_out) in enumerate(dims):
        kw, kb = jax.random.split(jax.random.fold_in(key, i))
        bound = 1.0 / jnp.sqrt(fan_in)
        w = jax.random.uniform(kw, (fan_in, fan_out), jnp.float32, -bound, bound)
        b = jax.random.uniform(kb, (1, fan_out), jnp.float32, -bound, bound)
        params += [w, b]
    return tuple(params)


def reference_forward(x, params):
    w1, b1, w2, b2, w3, b3 = params
    h = x.reshape(x.shape[0], -1)
    h = jnp.maximum(h @ w1 + b1, 0.0)
    h = jnp.maximum(h @ w2 + b2, 0.0)
    return h @ w3 + b3


if __name__ == "__main__":
    key = jax.random.PRNGKey(0)
    params = init_params(key)
    prepared = prepare_params(params)   # done once, reused across forward calls
    x = jax.random.normal(jax.random.fold_in(key, 99), (2, 1, 28, 28), jnp.float32)

    out = simple_nn_forward(x, prepared)
    out = jax.block_until_ready(out)

    ref = reference_forward(x, params)
    assert out.shape == (2, 10), out.shape
    # fc1 is full f32; fc2/fc3 use bf16 weights and the padded output is stored bf16,
    # so keep a loosened tolerance vs the pure-f32 reference.
    assert jnp.allclose(out, ref, atol=5e-2, rtol=5e-2), "mismatch vs pure-JAX reference"
    print("KERNEL_OK")
</pallas_src>

<mosaic_0001>
module attributes {stable_mosaic.version = 11 : i64} {
  func.func @_mlp_kernel(%arg0: i32, %arg1: memref<16x784xf32, #tpu.memory_space<vmem>>, %arg2: memref<784x128xf32, #tpu.memory_space<vmem>>, %arg3: memref<1x128xf32, #tpu.memory_space<vmem>>, %arg4: memref<128x128xbf16, #tpu.memory_space<vmem>>, %arg5: memref<1x128xf32, #tpu.memory_space<vmem>>, %arg6: memref<128x128xbf16, #tpu.memory_space<vmem>>, %arg7: memref<1x128xf32, #tpu.memory_space<vmem>>, %arg8: memref<16x128xbf16, #tpu.memory_space<vmem>>) attributes {dimension_semantics = [#tpu.dimension_semantics<parallel>], iteration_bounds = array<i64: 1>, scalar_prefetch = 0 : i64, scratch_operands = 0 : i64, tpu.core_type = #tpu.core_type<tc>, window_params = [{transform_indices = @transform_0, window_bounds = array<i64: 16, 784>}, {pipeline_mode = #tpu.pipeline_mode<synchronous>, transform_indices = @transform_1, window_bounds = array<i64: 784, 128>}, {pipeline_mode = #tpu.pipeline_mode<synchronous>, transform_indices = @transform_2, window_bounds = array<i64: 1, 128>}, {pipeline_mode = #tpu.pipeline_mode<synchronous>, transform_indices = @transform_3, window_bounds = array<i64: 128, 128>}, {pipeline_mode = #tpu.pipeline_mode<synchronous>, transform_indices = @transform_4, window_bounds = array<i64: 1, 128>}, {pipeline_mode = #tpu.pipeline_mode<synchronous>, transform_indices = @transform_5, window_bounds = array<i64: 128, 128>}, {pipeline_mode = #tpu.pipeline_mode<synchronous>, transform_indices = @transform_6, window_bounds = array<i64: 1, 128>}, {transform_indices = @transform_7, window_bounds = array<i64: 16, 128>}]} {
    %c0 = arith.constant 0 : index
    %c0_0 = arith.constant 0 : index
    %0 = vector.load %arg1[%c0, %c0_0] : memref<16x784xf32, #tpu.memory_space<vmem>>, vector<16x784xf32>
    %c0_1 = arith.constant 0 : index
    %c0_2 = arith.constant 0 : index
    %1 = vector.load %arg2[%c0_1, %c0_2] : memref<784x128xf32, #tpu.memory_space<vmem>>, vector<784x128xf32>
    %cst = arith.constant dense<0.000000e+00> : vector<16x128xf32>
    %2 = tpu.matmul %0, %1, %cst {dimension_numbers = #tpu.dot_dimension_numbers<[1], [0], [0], [1], [0, 0, 1, 1], [], []>} : vector<16x784xf32>, vector<784x128xf32>, vector<16x128xf32> -> vector<16x128xf32>
    %c0_3 = arith.constant 0 : index
    %c0_4 = arith.constant 0 : index
    %3 = vector.load %arg3[%c0_3, %c0_4] : memref<1x128xf32, #tpu.memory_space<vmem>>, vector<1x128xf32>
    %4 = vector.broadcast %3 : vector<1x128xf32> to vector<16x128xf32>
    %5 = arith.addf %2, %4 : vector<16x128xf32>
    %cst_5 = arith.constant 0.000000e+00 : f32
    %6 = vector.broadcast %cst_5 : f32 to vector<16x128xf32>
    %7 = arith.maximumf %5, %6 : vector<16x128xf32>
    %8 = arith.truncf %7 : vector<16x128xf32> to vector<16x128xbf16>
    %c0_6 = arith.constant 0 : index
    %c0_7 = arith.constant 0 : index
    %9 = vector.load %arg4[%c0_6, %c0_7] : memref<128x128xbf16, #tpu.memory_space<vmem>>, vector<128x128xbf16>
    %cst_8 = arith.constant dense<0.000000e+00> : vector<16x128xf32>
    %10 = tpu.matmul %8, %9, %cst_8 {dimension_numbers = #tpu.dot_dimension_numbers<[1], [0], [0], [1], [0, 0, 1, 1], [], []>} : vector<16x128xbf16>, vector<128x128xbf16>, vector<16x128xf32> -> vector<16x128xf32>
    %c0_9 = arith.constant 0 : index
    %c0_10 = arith.constant 0 : index
    %11 = vector.load %arg5[%c0_9, %c0_10] : memref<1x128xf32, #tpu.memory_space<vmem>>, vector<1x128xf32>
    %12 = vector.broadcast %11 : vector<1x128xf32> to vector<16x128xf32>
    %13 = arith.addf %10, %12 : vector<16x128xf32>
    %cst_11 = arith.constant 0.000000e+00 : f32
    %14 = vector.broadcast %cst_11 : f32 to vector<16x128xf32>
    %15 = arith.maximumf %13, %14 : vector<16x128xf32>
    %16 = arith.truncf %15 : vector<16x128xf32> to vector<16x128xbf16>
    %c0_12 = arith.constant 0 : index
    %c0_13 = arith.constant 0 : index
    %17 = vector.load %arg6[%c0_12, %c0_13] : memref<128x128xbf16, #tpu.memory_space<vmem>>, vector<128x128xbf16>
    %cst_14 = arith.constant dense<0.000000e+00> : vector<16x128xf32>
    %18 = tpu.matmul %16, %17, %cst_14 {dimension_numbers = #tpu.dot_dimension_numbers<[1], [0], [0], [1], [0, 0, 1, 1], [], []>} : vector<16x128xbf16>, vector<128x128xbf16>, vector<16x128xf32> -> vector<16x128xf32>
    %c0_15 = arith.constant 0 : index
    %c0_16 = arith.constant 0 : index
    %19 = vector.load %arg7[%c0_15, %c0_16] : memref<1x128xf32, #tpu.memory_space<vmem>>, vector<1x128xf32>
    %20 = vector.broadcast %19 : vector<1x128xf32> to vector<16x128xf32>
    %21 = arith.addf %18, %20 : vector<16x128xf32>
    %22 = arith.truncf %21 : vector<16x128xf32> to vector<16x128xbf16>
    %c0_17 = arith.constant 0 : index
    %c0_18 = arith.constant 0 : index
    %23 = vector.load %arg8[%c0_17, %c0_18] : memref<16x128xbf16, #tpu.memory_space<vmem>>, vector<16x128xbf16>
    tpu.vector_store %arg8[%c0_17, %c0_18], %22 {strides = array<i32>} : memref<16x128xbf16, #tpu.memory_space<vmem>>, vector<16x128xbf16>,
    return
  }
  func.func @transform_0(%arg0: i32) -> (i32, i32) {
    %c0_i32 = arith.constant 0 : i32
    %c0_i32_0 = arith.constant 0 : i32
    return %arg0, %c0_i32 : i32, i32
  }
  func.func @transform_1(%arg0: i32) -> (i32, i32) {
    %c0_i32 = arith.constant 0 : i32
    %c0_i32_0 = arith.constant 0 : i32
    %c0_i32_1 = arith.constant 0 : i32
    return %c0_i32, %c0_i32_0 : i32, i32
  }
  func.func @transform_2(%arg0: i32) -> (i32, i32) {
    %c0_i32 = arith.constant 0 : i32
    %c0_i32_0 = arith.constant 0 : i32
    %c0_i32_1 = arith.constant 0 : i32
    return %c0_i32, %c0_i32_0 : i32, i32
  }
  func.func @transform_3(%arg0: i32) -> (i32, i32) {
    %c0_i32 = arith.constant 0 : i32
    %c0_i32_0 = arith.constant 0 : i32
    %c0_i32_1 = arith.constant 0 : i32
    return %c0_i32, %c0_i32_0 : i32, i32
  }
  func.func @transform_4(%arg0: i32) -> (i32, i32) {
    %c0_i32 = arith.constant 0 : i32
    %c0_i32_0 = arith.constant 0 : i32
    %c0_i32_1 = arith.constant 0 : i32
    return %c0_i32, %c0_i32_0 : i32, i32
  }
  func.func @transform_5(%arg0: i32) -> (i32, i32) {
    %c0_i32 = arith.constant 0 : i32
    %c0_i32_0 = arith.constant 0 : i32
    %c0_i32_1 = arith.constant 0 : i32
    return %c0_i32, %c0_i32_0 : i32, i32
  }
  func.func @transform_6(%arg0: i32) -> (i32, i32) {
    %c0_i32 = arith.constant 0 : i32
    %c0_i32_0 = arith.constant 0 : i32
    %c0_i32_1 = arith.constant 0 : i32
    return %c0_i32, %c0_i32_0 : i32, i32
  }
  func.func @transform_7(%arg0: i32) -> (i32, i32) {
    %c0_i32 = arith.constant 0 : i32
    %c0_i32_0 = arith.constant 0 : i32
    return %arg0, %c0_i32 : i32, i32
  }
}

</mosaic_0001>

<llo_original>
// kernel: tpu_custom_call.1
$region0: #{tpu_custom_call.1}
  #allocation0 [shape = 'u32[]', space=smem, size = 0x4, offset = 0x4, fixed_abs, tag = 'smem constant byte address 0x4 - core index']
  #allocation1 [shape = 'u32[144,128]{1,0:T(1,128)}', space=vmem, size = 0x12000, scoped, tag = 'internal scratch']
  %s0 = inlined_call_operand.hbm [shape: f32[16,784], index: 0, kind: input, shape index: {}]
  %s1 = inlined_call_operand.hbm [shape: f32[784,128], index: 1, kind: input, shape index: {}]
  %s2 = inlined_call_operand.vmem [shape: f32[1,128], index: 2, kind: input, shape index: {}]
  %s3 = inlined_call_operand.hbm [shape: bf16[128,128], index: 3, kind: input, shape index: {}]
  %s4 = inlined_call_operand.vmem [shape: f32[1,128], index: 4, kind: input, shape index: {}]
  %s5 = inlined_call_operand.hbm [shape: bf16[128,128], index: 5, kind: input, shape index: {}]
  %s6 = inlined_call_operand.vmem [shape: f32[1,128], index: 6, kind: input, shape index: {}]
  %s7 = inlined_call_operand.hbm [shape: bf16[16,128], index: 7, kind: output, shape index: {}]
  %s8 = sld [smem:[#allocation0]]
  $region54: #{tpu_custom_call.1} parent=0
    _
  %s10 = ssub.s32 1, %s8
  %s11 = scalar_select 0, %s10, %s8
  $region1: #{tpu_custom_call.1} parent=0
    #allocation2 [shape = 'u8[57344]{0}', space=vmem, size = 0xe000, scoped, tag = 'input window, operand 0, single buffered']
    #allocation3 [shape = 's32[1]{0}', space=sflag, size = 0x4, scoped, tag = 'scoped memory for tpu_custom_call.1']
    #allocation4 [shape = 's32[1]{0}', space=sflag, size = 0x4, scoped, tag = 'scoped memory for tpu_custom_call.1']
    #allocation5 [shape = 'u8[401408]{0}', space=vmem, size = 0x62000, scoped, tag = 'input window, operand 1, single buffered']
    #allocation6 [shape = 's32[1]{0}', space=sflag, size = 0x4, scoped, tag = 'scoped memory for tpu_custom_call.1']
    #allocation7 [shape = 'u8[32768]{0}', space=vmem, size = 0x8000, scoped, tag = 'input window, operand 3, single buffered']
    #allocation8 [shape = 'u8[32768]{0}', space=vmem, size = 0x8000, scoped, tag = 'input window, operand 5, single buffered']
    #allocation9 [shape = 's32[1]{0}', space=sflag, size = 0x4, scoped, tag = 'scoped memory for tpu_custom_call.1']
    #allocation10 [shape = 'u8[4096]{0}', space=vmem, size = 0x1000, scoped, tag = 'output window, operand 0, single buffered']
    %12 = vsyncpa [#allocation3], 0
    %13 = vsyncpa [#allocation6], 0
    %14 = vsyncpa [#allocation9], 0
    %15 = vsyncpa [#allocation4], 0
    // Predicated region
    $region2: #{tpu_custom_call.1} parent=1 // pred_check
      _
    $region3: #{tpu_custom_call.1} parent=1 // pred_check_branch
      %17 = sbr.rel (0) target = $region5
    $region4: #{tpu_custom_call.1} parent=1 // pred_region
      %s19 = ssub.s32 1792, 1792
      %20 = vsyncadd [#allocation3], %s19
      %s21 = sshll.u32 [#allocation2], 4
      %s22 = int_to_ptr.vmem [resolvable:$true] %s21
      %27 = dma.hbm_to_vmem [thread:$0]  %s0, 1792, %s22, [#allocation3], 896, 896, 56
    $region5: #{tpu_custom_call.1} parent=1 // pred_fallthru
      _
    // Predicated region
    $region6: #{tpu_custom_call.1} parent=1 // pred_check
      _
    $region7: #{tpu_custom_call.1} parent=1 // pred_check_branch
      %29 = sbr.rel (0) target = $region9
    $region8: #{tpu_custom_call.1} parent=1 // pred_region
      %s31 = ssub.s32 12544, 12544
      %32 = vsyncadd [#allocation6], %s31
      %s33 = sshll.u32 [#allocation5], 4
      %s34 = int_to_ptr.vmem [resolvable:$true] %s33
      %39 = dma.hbm_to_vmem [thread:$0]  %s1, 12544, %s34, [#allocation6], 128, 128, 8
    $region9: #{tpu_custom_call.1} parent=1 // pred_fallthru
      _
    // Predicated region
    $region10: #{tpu_custom_call.1} parent=1 // pred_check
      _
    $region11: #{tpu_custom_call.1} parent=1 // pred_check_branch
      %41 = sbr.rel (0) target = $region13
    $region12: #{tpu_custom_call.1} parent=1 // pred_region
      _
    $region13: #{tpu_custom_call.1} parent=1 // pred_fallthru
      _
    // Predicated region
    $region14: #{tpu_custom_call.1} parent=1 // pred_check
      _
    $region15: #{tpu_custom_call.1} parent=1 // pred_check_branch
      %43 = sbr.rel (0) target = $region17
    $region16: #{tpu_custom_call.1} parent=1 // pred_region
      %s45 = ssub.s32 1024, 1024
      %46 = vsyncadd [#allocation6], %s45
      %s47 = sshll.u32 [#allocation7], 4
      %s48 = int_to_ptr.vmem [resolvable:$true] %s47
      %53 = dma.hbm_to_vmem [thread:$0]  %s3, 1024, %s48, [#allocation6], 64, 64, 4
    $region17: #{tpu_custom_call.1} parent=1 // pred_fallthru
      _
    // Predicated region
    $region18: #{tpu_custom_call.1} parent=1 // pred_check
      _
    $region19: #{tpu_custom_call.1} parent=1 // pred_check_branch
      %55 = sbr.rel (0) target = $region21
    $region20: #{tpu_custom_call.1} parent=1 // pred_region
      _
    $region21: #{tpu_custom_call.1} parent=1 // pred_fallthru
      _
    // Predicated region
    $region22: #{tpu_custom_call.1} parent=1 // pred_check
      _
    $region23: #{tpu_custom_call.1} parent=1 // pred_check_branch
      %57 = sbr.rel (0) target = $region25
    $region24: #{tpu_custom_call.1} parent=1 // pred_region
      %s59 = ssub.s32 1024, 1024
      %60 = vsyncadd [#allocation9], %s59
      %s61 = sshll.u32 [#allocation8], 4
      %s62 = int_to_ptr.vmem [resolvable:$true] %s61
      %67 = dma.hbm_to_vmem [thread:$0]  %s5, 1024, %s62, [#allocation9], 64, 64, 4
    $region25: #{tpu_custom_call.1} parent=1 // pred_fallthru
      _
    // Predicated region
    $region26: #{tpu_custom_call.1} parent=1 // pred_check
      _
    $region27: #{tpu_custom_call.1} parent=1 // pred_check_branch
      %69 = sbr.rel (0) target = $region29
    $region28: #{tpu_custom_call.1} parent=1 // pred_region
      _
    $region29: #{tpu_custom_call.1} parent=1 // pred_fallthru
      _
    // Predicated region
    $region30: #{tpu_custom_call.1} parent=1 // pred_check
      _
    $region31: #{tpu_custom_call.1} parent=1 // pred_check_branch
      %71 = sbr.rel (0) target = $region33
    $region32: #{tpu_custom_call.1} parent=1 // pred_region
      %72 = dma.done [#allocation3], 1792
    $region33: #{tpu_custom_call.1} parent=1 // pred_fallthru
      _
    // Predicated region
    $region34: #{tpu_custom_call.1} parent=1 // pred_check
      _
    $region35: #{tpu_custom_call.1} parent=1 // pred_check_branch
      %74 = sbr.rel (0) target = $region37
    $region36: #{tpu_custom_call.1} parent=1 // pred_region
      %75 = dma.done [#allocation6], 12544
    $region37: #{tpu_custom_call.1} parent=1 // pred_fallthru
      _
    // Predicated region
    $region38: #{tpu_custom_call.1} parent=1 // pred_check
      _
    $region39: #{tpu_custom_call.1} parent=1 // pred_check_branch
      %77 = sbr.rel (0) target = $region41
    $region40: #{tpu_custom_call.1} parent=1 // pred_region
      %78 = dma.done [#allocation6], 1024
    $region41: #{tpu_custom_call.1} parent=1 // pred_fallthru
      _
    // Predicated region
    $region42: #{tpu_custom_call.1} parent=1 // pred_check
      _
    $region43: #{tpu_custom_call.1} parent=1 // pred_check_branch
      %80 = sbr.rel (0) target = $region45
    $region44: #{tpu_custom_call.1} parent=1 // pred_region
      %81 = dma.done [#allocation9], 1024
    $region45: #{tpu_custom_call.1} parent=1 // pred_fallthru
      _
    %v83 = vld [vmem:[#allocation2] sm:$0xff]
    %v84 = vld [vmem:[#allocation2 + $0x8] sm:$0xff]
    %v85 = vld [vmem:[#allocation2 + $0x10] sm:$0xff]
    %v86 = vld [vmem:[#allocation2 + $0x18] sm:$0xff]
    %v87 = vld [vmem:[#allocation2 + $0x20] sm:$0xff]
    %v88 = vld [vmem:[#allocation2 + $0x28] sm:$0xff]
    %v89 = vld [vmem:[#allocation2 + $0x30] sm:$0xff]
    %v90 = vld [vmem:[#allocation2 + $0x38] sm:$0xff]
    %v91 = vld [vmem:[#allocation2 + $0x40] sm:$0xff]
    %v92 = vld [vmem:[#allocation2 + $0x48] sm:$0xff]
    %v93 = vld [vmem:[#allocation2 + $0x50] sm:$0xff]
    %v94 = vld [vmem:[#allocation2 + $0x58] sm:$0xff]
    %v95 = vld [vmem:[#allocation2 + $0x60] sm:$0xff]
    %v96 = vld [vmem:[#allocation2 + $0x68] sm:$0xff]
    %v97 = vld [vmem:[#allocation5] sm:$0xff]
    %v98 = vld [vmem:[#allocation5 + $0x8] sm:$0xff]
    %v99 = vld [vmem:[#allocation5 + $0x10] sm:$0xff]
    %v100 = vld [vmem:[#allocation5 + $0x18] sm:$0xff]
    %v101 = vld [vmem:[#allocation5 + $0x20] sm:$0xff]
    %v102 = vld [vmem:[#allocation5 + $0x28] sm:$0xff]
    %v103 = vld [vmem:[#allocation5 + $0x30] sm:$0xff]
    %v104 = vld [vmem:[#allocation5 + $0x38] sm:$0xff]
    %v105 = vld [vmem:[#allocation5 + $0x40] sm:$0xff]
    %v106 = vld [vmem:[#allocation5 + $0x48] sm:$0xff]
    %v107 = vld [vmem:[#allocation5 + $0x50] sm:$0xff]
    %v108 = vld [vmem:[#allocation5 + $0x58] sm:$0xff]
    %v109 = vld [vmem:[#allocation5 + $0x60] sm:$0xff]
    %v110 = vld [vmem:[#allocation5 + $0x68] sm:$0xff]
    %v111 = vld [vmem:[#allocation5 + $0x70] sm:$0xff]
    %v112 = vld [vmem:[#allocation5 + $0x78] sm:$0xff]
    %v113 = vld [vmem:[#allocation5 + $0x80] sm:$0xff]
    %v114 = vld [vmem:[#allocation5 + $0x88] sm:$0xff]
    %v115 = vld [vmem:[#allocation5 + $0x90] sm:$0xff]
    %v116 = vld [vmem:[#allocation5 + $0x98] sm:$0xff]
    %v117 = vld [vmem:[#allocation5 + $0xa0] sm:$0xff]
    %v118 = vld [vmem:[#allocation5 + $0xa8] sm:$0xff]
    %v119 = vld [vmem:[#allocation5 + $0xb0] sm:$0xff]
    %v120 = vld [vmem:[#allocation5 + $0xb8] sm:$0xff]
    %v121 = vld [vmem:[#allocation5 + $0xc0] sm:$0xff]
    %v122 = vld [vmem:[#allocation5 + $0xc8] sm:$0xff]
    %v123 = vld [vmem:[#allocation5 + $0xd0] sm:$0xff]
    %v124 = vld [vmem:[#allocation5 + $0xd8] sm:$0xff]
    %v125 = vld [vmem:[#allocation5 + $0xe0] sm:$0xff]
    %v126 = vld [vmem:[#allocation5 + $0xe8] sm:$0xff]
    %v127 = vld [vmem:[#allocation5 + $0xf0] sm:$0xff]
    %v128 = vld [vmem:[#allocation5 + $0xf8] sm:$0xff]
    %v129 = vld [vmem:[#allocation5 + $0x100] sm:$0xff]
    %v130 = vld [vmem:[#allocation5 + $0x108] sm:$0xff]
    %v131 = vld [vmem:[#allocation5 + $0x110] sm:$0xff]
    %v132 = vld [vmem:[#allocation5 + $0x118] sm:$0xff]
    %v133 = vld [vmem:[#allocation5 + $0x120] sm:$0xff]
    %v134 = vld [vmem:[#allocation5 + $0x128] sm:$0xff]
    %v135 = vld [vmem:[#allocation5 + $0x130] sm:$0xff]
    %v136 = vld [vmem:[#allocation5 + $0x138] sm:$0xff]
    %v137 = vld [vmem:[#allocation5 + $0x140] sm:$0xff]
    %v138 = vld [vmem:[#allocation5 + $0x148] sm:$0xff]
    %v139 = vld [vmem:[#allocation5 + $0x150] sm:$0xff]
    %v140 = vld [vmem:[#allocation5 + $0x158] sm:$0xff]
    %v141 = vld [vmem:[#allocation5 + $0x160] sm:$0xff]
    %v142 = vld [vmem:[#allocation5 + $0x168] sm:$0xff]
    %v143 = vld [vmem:[#allocation5 + $0x170] sm:$0xff]
    %v144 = vld [vmem:[#allocation5 + $0x178] sm:$0xff]
    %v145 = vld [vmem:[#allocation5 + $0x180] sm:$0xff]
    %v146 = vld [vmem:[#allocation5 + $0x188] sm:$0xff]
    %v147 = vld [vmem:[#allocation5 + $0x190] sm:$0xff]
    %v148 = vld [vmem:[#allocation5 + $0x198] sm:$0xff]
    %v149 = vld [vmem:[#allocation5 + $0x1a0] sm:$0xff]
    %v150 = vld [vmem:[#allocation5 + $0x1a8] sm:$0xff]
    %v151 = vld [vmem:[#allocation5 + $0x1b0] sm:$0xff]
    %v152 = vld [vmem:[#allocation5 + $0x1b8] sm:$0xff]
    %v153 = vld [vmem:[#allocation5 + $0x1c0] sm:$0xff]
    %v154 = vld [vmem:[#allocation5 + $0x1c8] sm:$0xff]
    %v155 = vld [vmem:[#allocation5 + $0x1d0] sm:$0xff]
    %v156 = vld [vmem:[#allocation5 + $0x1d8] sm:$0xff]
    %v157 = vld [vmem:[#allocation5 + $0x1e0] sm:$0xff]
    %v158 = vld [vmem:[#allocation5 + $0x1e8] sm:$0xff]
    %v159 = vld [vmem:[#allocation5 + $0x1f0] sm:$0xff]
    %v160 = vld [vmem:[#allocation5 + $0x1f8] sm:$0xff]
    %v161 = vld [vmem:[#allocation5 + $0x200] sm:$0xff]
    %v162 = vld [vmem:[#allocation5 + $0x208] sm:$0xff]
    %v163 = vld [vmem:[#allocation5 + $0x210] sm:$0xff]
    %v164 = vld [vmem:[#allocation5 + $0x218] sm:$0xff]
    %v165 = vld [vmem:[#allocation5 + $0x220] sm:$0xff]
    %v166 = vld [vmem:[#allocation5 + $0x228] sm:$0xff]
    %v167 = vld [vmem:[#allocation5 + $0x230] sm:$0xff]
    %v168 = vld [vmem:[#allocation5 + $0x238] sm:$0xff]
    %v169 = vld [vmem:[#allocation5 + $0x240] sm:$0xff]
    %v170 = vld [vmem:[#allocation5 + $0x248] sm:$0xff]
    %v171 = vld [vmem:[#allocation5 + $0x250] sm:$0xff]
    %v172 = vld [vmem:[#allocation5 + $0x258] sm:$0xff]
    %v173 = vld [vmem:[#allocation5 + $0x260] sm:$0xff]
    %v174 = vld [vmem:[#allocation5 + $0x268] sm:$0xff]
    %v175 = vld [vmem:[#allocation5 + $0x270] sm:$0xff]
    %v176 = vld [vmem:[#allocation5 + $0x278] sm:$0xff]
    %v177 = vld [vmem:[#allocation5 + $0x280] sm:$0xff]
    %v178 = vld [vmem:[#allocation5 + $0x288] sm:$0xff]
    %v179 = vld [vmem:[#allocation5 + $0x290] sm:$0xff]
    %v180 = vld [vmem:[#allocation5 + $0x298] sm:$0xff]
    %v181 = vld [vmem:[#allocation5 + $0x2a0] sm:$0xff]
    %v182 = vld [vmem:[#allocation5 + $0x2a8] sm:$0xff]
    %v183 = vld [vmem:[#allocation5 + $0x2b0] sm:$0xff]
    %v184 = vld [vmem:[#allocation5 + $0x2b8] sm:$0xff]
    %v185 = vld [vmem:[#allocation5 + $0x2c0] sm:$0xff]
    %v186 = vld [vmem:[#allocation5 + $0x2c8] sm:$0xff]
    %v187 = vld [vmem:[#allocation5 + $0x2d0] sm:$0xff]
    %v188 = vld [vmem:[#allocation5 + $0x2d8] sm:$0xff]
    %v189 = vld [vmem:[#allocation5 + $0x2e0] sm:$0xff]
    %v190 = vld [vmem:[#allocation5 + $0x2e8] sm:$0xff]
    %v191 = vld [vmem:[#allocation5 + $0x2f0] sm:$0xff]
    %v192 = vld [vmem:[#allocation5 + $0x2f8] sm:$0xff]
    %v193 = vld [vmem:[#allocation5 + $0x300] sm:$0xff]
    %v194 = vld [vmem:[#allocation5 + $0x308] sm:$0xff]
    %v195 = vld [vmem:[%s2] sm:$0x1]
    %v197 = vlaneseq
    %v198 = vshrl.u32 %v197, 7
    %v199 = vsub.s32 0, %v198
    %v200 = vrot.slane %v195, %v199
    %vm202 = vcmask 130048
    %v204 = vsel %vm202, %v89, 0
    %v207 = vsel %vm202, %v96, 0
    %209 = vmatprep.subr.mxu0 0.0
    %210 = vmatpush1.msra.mxu0 %v112
    %211 = vmatprep.subr.mxu0 0.0
    %212 = vmatpush1.msra.mxu0 %v111
    %213 = vmatprep.subr.mxu0 0.0
    %214 = vmatpush1.msra.mxu0 %v110
    %215 = vmatprep.subr.mxu0 0.0
    %216 = vmatpush1.msra.mxu0 %v109
    %217 = vmatprep.subr.mxu0 0.0
    %218 = vmatpush1.msra.mxu0 %v108
    %219 = vmatprep.subr.mxu0 0.0
    %220 = vmatpush1.msra.mxu0 %v107
    %221 = vmatprep.subr.mxu0 0.0
    %222 = vmatpush1.msra.mxu0 %v106
    %223 = vmatprep.subr.mxu0 0.0
    %224 = vmatpush1.msra.mxu0 %v105
    %225 = vmatprep.subr.mxu0 0.0
    %226 = vmatpush1.msra.mxu0 %v104
    %227 = vmatprep.subr.mxu0 0.0
    %228 = vmatpush1.msra.mxu0 %v103
    %229 = vmatprep.subr.mxu0 0.0
    %230 = vmatpush1.msra.mxu0 %v102
    %231 = vmatprep.subr.mxu0 0.0
    %232 = vmatpush1.msra.mxu0 %v101
    %233 = vmatprep.subr.mxu0 0.0
    %234 = vmatpush1.msra.mxu0 %v100
    %235 = vmatprep.subr.mxu0 0.0
    %236 = vmatpush1.msra.mxu0 %v99
    %237 = vmatprep.subr.mxu0 0.0
    %238 = vmatpush1.msra.mxu0 %v98
    %239 = vmatprep.subr.mxu0 0.0
    %240 = vmatpush1.msra.mxu0 %v97
    %241 = vmatprep.subr.mxu0 0.0
    %242 = vmatpush2.msra.mxu0 %v128
    %243 = vmatprep.subr.mxu0 0.0
    %244 = vmatpush2.msra.mxu0 %v127
    %245 = vmatprep.subr.mxu0 0.0
    %246 = vmatpush2.msra.mxu0 %v126
    %247 = vmatprep.subr.mxu0 0.0
    %248 = vmatpush2.msra.mxu0 %v125
    %249 = vmatprep.subr.mxu0 0.0
    %250 = vmatpush2.msra.mxu0 %v124
    %251 = vmatprep.subr.mxu0 0.0
    %252 = vmatpush2.msra.mxu0 %v123
    %253 = vmatprep.subr.mxu0 0.0
    %254 = vmatpush2.msra.mxu0 %v122
    %255 = vmatprep.subr.mxu0 0.0
    %256 = vmatpush2.msra.mxu0 %v121
    %257 = vmatprep.subr.mxu0 0.0
    %258 = vmatpush2.msra.mxu0 %v120
    %259 = vmatprep.subr.mxu0 0.0
    %260 = vmatpush2.msra.mxu0 %v119
    %261 = vmatprep.subr.mxu0 0.0
    %262 = vmatpush2.msra.mxu0 %v118
    %263 = vmatprep.subr.mxu0 0.0
    %264 = vmatpush2.msra.mxu0 %v117
    %265 = vmatprep.subr.mxu0 0.0
    %266 = vmatpush2.msra.mxu0 %v116
    %267 = vmatprep.subr.mxu0 0.0
    %268 = vmatpush2.msra.mxu0 %v115
    %269 = vmatprep.subr.mxu0 0.0
    %270 = vmatpush2.msra.mxu0 %v114
    %271 = vmatprep.subr.mxu0 0.0
    %272 = vmatpush2.msra.mxu0 %v113
    %273 = vmatprep.mubr.f32.mxu0 %v84
    %274 = vmatmul.mubr.f32.gmra.mxu0 %v83
    %v275 = vpop.f32.mrf.mxu0
    %v276 = vadd.f32 %v200, %v275
    %v277 = vpop.f32.mrf.mxu0
    %278 = vmatprep.mubr.f32.mxu0 %v91
    %279 = vmatmul.mubr.f32.gmra.mxu0 %v90
    %v280 = vpop.f32.mrf.mxu0
    %v281 = vadd.f32 %v200, %v280
    %v282 = vpop.f32.mrf.mxu0
    %283 = vdwg.mxu0
    %284 = vmatprep.subr.mxu0 0.0
    %285 = vmatpush1.msra.mxu0 %v144
    %286 = vmatprep.subr.mxu0 0.0
    %287 = vmatpush1.msra.mxu0 %v143
    %288 = vmatprep.subr.mxu0 0.0
    %289 = vmatpush1.msra.mxu0 %v142
    %290 = vmatprep.subr.mxu0 0.0
    %291 = vmatpush1.msra.mxu0 %v141
    %292 = vmatprep.subr.mxu0 0.0
    %293 = vmatpush1.msra.mxu0 %v140
    %294 = vmatprep.subr.mxu0 0.0
    %295 = vmatpush1.msra.mxu0 %v139
    %296 = vmatprep.subr.mxu0 0.0
    %297 = vmatpush1.msra.mxu0 %v138
    %298 = vmatprep.subr.mxu0 0.0
    %299 = vmatpush1.msra.mxu0 %v137
    %300 = vmatprep.subr.mxu0 0.0
    %301 = vmatpush1.msra.mxu0 %v136
    %302 = vmatprep.subr.mxu0 0.0
    %303 = vmatpush1.msra.mxu0 %v135
    %304 = vmatprep.subr.mxu0 0.0
    %305 = vmatpush1.msra.mxu0 %v134
    %306 = vmatprep.subr.mxu0 0.0
    %307 = vmatpush1.msra.mxu0 %v133
    %308 = vmatprep.subr.mxu0 0.0
    %309 = vmatpush1.msra.mxu0 %v132
    %310 = vmatprep.subr.mxu0 0.0
    %311 = vmatpush1.msra.mxu0 %v131
    %312 = vmatprep.subr.mxu0 0.0
    %313 = vmatpush1.msra.mxu0 %v130
    %314 = vmatprep.subr.mxu0 0.0
    %315 = vmatpush1.msra.mxu0 %v129
    %316 = vmatprep.subr.mxu0 0.0
    %317 = vmatpush2.msra.mxu0 %v160
    %318 = vmatprep.subr.mxu0 0.0
    %319 = vmatpush2.msra.mxu0 %v159
    %320 = vmatprep.subr.mxu0 0.0
    %321 = vmatpush2.msra.mxu0 %v158
    %322 = vmatprep.subr.mxu0 0.0
    %323 = vmatpush2.msra.mxu0 %v157
    %324 = vmatprep.subr.mxu0 0.0
    %325 = vmatpush2.msra.mxu0 %v156
    %326 = vmatprep.subr.mxu0 0.0
    %327 = vmatpush2.msra.mxu0 %v155
    %328 = vmatprep.subr.mxu0 0.0
    %329 = vmatpush2.msra.mxu0 %v154
    %330 = vmatprep.subr.mxu0 0.0
    %331 = vmatpush2.msra.mxu0 %v153
    %332 = vmatprep.subr.mxu0 0.0
    %333 = vmatpush2.msra.mxu0 %v152
    %334 = vmatprep.subr.mxu0 0.0
    %335 = vmatpush2.msra.mxu0 %v151
    %336 = vmatprep.subr.mxu0 0.0
    %337 = vmatpush2.msra.mxu0 %v150
    %338 = vmatprep.subr.mxu0 0.0
    %339 = vmatpush2.msra.mxu0 %v149
    %340 = vmatprep.subr.mxu0 0.0
    %341 = vmatpush2.msra.mxu0 %v148
    %342 = vmatprep.subr.mxu0 0.0
    %343 = vmatpush2.msra.mxu0 %v147
    %344 = vmatprep.subr.mxu0 0.0
    %345 = vmatpush2.msra.mxu0 %v146
    %346 = vmatprep.subr.mxu0 0.0
    %347 = vmatpush2.msra.mxu0 %v145
    %348 = vmatprep.mubr.f32.mxu0 %v86
    %349 = vmatmul.mubr.f32.gmra.mxu0 %v85
    %v350 = vpop.f32.mrf.mxu0
    %v351 = vadd.f32 %v276, %v350
    %v352 = vpop.f32.mrf.mxu0
    %353 = vmatprep.mubr.f32.mxu0 %v93
    %354 = vmatmul.mubr.f32.gmra.mxu0 %v92
    %v355 = vpop.f32.mrf.mxu0
    %v356 = vadd.f32 %v281, %v355
    %v357 = vpop.f32.mrf.mxu0
    %358 = vdwg.mxu0
    %359 = vmatprep.subr.mxu0 0.0
    %360 = vmatpush1.msra.mxu0 %v176
    %361 = vmatprep.subr.mxu0 0.0
    %362 = vmatpush1.msra.mxu0 %v175
    %363 = vmatprep.subr.mxu0 0.0
    %364 = vmatpush1.msra.mxu0 %v174
    %365 = vmatprep.subr.mxu0 0.0
    %366 = vmatpush1.msra.mxu0 %v173
    %367 = vmatprep.subr.mxu0 0.0
    %368 = vmatpush1.msra.mxu0 %v172
    %369 = vmatprep.subr.mxu0 0.0
    %370 = vmatpush1.msra.mxu0 %v171
    %371 = vmatprep.subr.mxu0 0.0
    %372 = vmatpush1.msra.mxu0 %v170
    %373 = vmatprep.subr.mxu0 0.0
    %374 = vmatpush1.msra.mxu0 %v169
    %375 = vmatprep.subr.mxu0 0.0
    %376 = vmatpush1.msra.mxu0 %v168
    %377 = vmatprep.subr.mxu0 0.0
    %378 = vmatpush1.msra.mxu0 %v167
    %379 = vmatprep.subr.mxu0 0.0
    %380 = vmatpush1.msra.mxu0 %v166
    %381 = vmatprep.subr.mxu0 0.0
    %382 = vmatpush1.msra.mxu0 %v165
    %383 = vmatprep.subr.mxu0 0.0
    %384 = vmatpush1.msra.mxu0 %v164
    %385 = vmatprep.subr.mxu0 0.0
    %386 = vmatpush1.msra.mxu0 %v163
    %387 = vmatprep.subr.mxu0 0.0
    %388 = vmatpush1.msra.mxu0 %v162
    %389 = vmatprep.subr.mxu0 0.0
    %390 = vmatpush1.msra.mxu0 %v161
    %391 = vmatprep.subr.mxu0 0.0
    %392 = vmatpush2.msra.mxu0 %v192
    %393 = vmatprep.subr.mxu0 0.0
    %394 = vmatpush2.msra.mxu0 %v191
    %395 = vmatprep.subr.mxu0 0.0
    %396 = vmatpush2.msra.mxu0 %v190
    %397 = vmatprep.subr.mxu0 0.0
    %398 = vmatpush2.msra.mxu0 %v189
    %399 = vmatprep.subr.mxu0 0.0
    %400 = vmatpush2.msra.mxu0 %v188
    %401 = vmatprep.subr.mxu0 0.0
    %402 = vmatpush2.msra.mxu0 %v187
    %403 = vmatprep.subr.mxu0 0.0
    %404 = vmatpush2.msra.mxu0 %v186
    %405 = vmatprep.subr.mxu0 0.0
    %406 = vmatpush2.msra.mxu0 %v185
    %407 = vmatprep.subr.mxu0 0.0
    %408 = vmatpush2.msra.mxu0 %v184
    %409 = vmatprep.subr.mxu0 0.0
    %410 = vmatpush2.msra.mxu0 %v183
    %411 = vmatprep.subr.mxu0 0.0
    %412 = vmatpush2.msra.mxu0 %v182
    %413 = vmatprep.subr.mxu0 0.0
    %414 = vmatpush2.msra.mxu0 %v181
    %415 = vmatprep.subr.mxu0 0.0
    %416 = vmatpush2.msra.mxu0 %v180
    %417 = vmatprep.subr.mxu0 0.0
    %418 = vmatpush2.msra.mxu0 %v179
    %419 = vmatprep.subr.mxu0 0.0
    %420 = vmatpush2.msra.mxu0 %v178
    %421 = vmatprep.subr.mxu0 0.0
    %422 = vmatpush2.msra.mxu0 %v177
    %423 = vmatprep.mubr.f32.mxu0 %v88
    %424 = vmatmul.mubr.f32.gmra.mxu0 %v87
    %v425 = vpop.f32.mrf.mxu0
    %v426 = vadd.f32 %v351, %v425
    %v427 = vpop.f32.mrf.mxu0
    %428 = vmatprep.mubr.f32.mxu0 %v95
    %429 = vmatmul.mubr.f32.gmra.mxu0 %v94
    %v430 = vpop.f32.mrf.mxu0
    %v431 = vadd.f32 %v356, %v430
    %v432 = vpop.f32.mrf.mxu0
    %433 = vdwg.mxu0
    %434 = vmatprep.subr.mxu0 0.0
    %435 = vmatpush1.msra.mxu0 0.0
    %436 = vmatprep.subr.mxu0 0.0
    %437 = vmatpush1.msra.mxu0 0.0
    %438 = vmatprep.subr.mxu0 0.0
    %439 = vmatpush1.msra.mxu0 0.0
    %440 = vmatprep.subr.mxu0 0.0
    %441 = vmatpush1.msra.mxu0 0.0
    %442 = vmatprep.subr.mxu0 0.0
    %443 = vmatpush1.msra.mxu0 0.0
    %444 = vmatprep.subr.mxu0 0.0
    %445 = vmatpush1.msra.mxu0 0.0
    %446 = vmatprep.subr.mxu0 0.0
    %447 = vmatpush1.msra.mxu0 0.0
    %448 = vmatprep.subr.mxu0 0.0
    %449 = vmatpush1.msra.mxu0 0.0
    %450 = vmatprep.subr.mxu0 0.0
    %451 = vmatpush1.msra.mxu0 0.0
    %452 = vmatprep.subr.mxu0 0.0
    %453 = vmatpush1.msra.mxu0 0.0
    %454 = vmatprep.subr.mxu0 0.0
    %455 = vmatpush1.msra.mxu0 0.0
    %456 = vmatprep.subr.mxu0 0.0
    %457 = vmatpush1.msra.mxu0 0.0
    %458 = vmatprep.subr.mxu0 0.0
    %459 = vmatpush1.msra.mxu0 0.0
    %460 = vmatprep.subr.mxu0 0.0
    %461 = vmatpush1.msra.mxu0 0.0
    %462 = vmatprep.subr.mxu0 0.0
    %463 = vmatpush1.msra.mxu0 %v194
    %464 = vmatprep.subr.mxu0 0.0
    %465 = vmatpush1.msra.mxu0 %v193
    %466 = vmatprep.subr.mxu0 0.0
    %467 = vmatpush2.msra.mxu0 0.0
    %468 = vmatprep.subr.mxu0 0.0
    %469 = vmatpush2.msra.mxu0 0.0
    %470 = vmatprep.subr.mxu0 0.0
    %471 = vmatpush2.msra.mxu0 0.0
    %472 = vmatprep.subr.mxu0 0.0
    %473 = vmatpush2.msra.mxu0 0.0
    %474 = vmatprep.subr.mxu0 0.0
    %475 = vmatpush2.msra.mxu0 0.0
    %476 = vmatprep.subr.mxu0 0.0
    %477 = vmatpush2.msra.mxu0 0.0
    %478 = vmatprep.subr.mxu0 0.0
    %479 = vmatpush2.msra.mxu0 0.0
    %480 = vmatprep.subr.mxu0 0.0
    %481 = vmatpush2.msra.mxu0 0.0
    %482 = vmatprep.subr.mxu0 0.0
    %483 = vmatpush2.msra.mxu0 0.0
    %484 = vmatprep.subr.mxu0 0.0
    %485 = vmatpush2.msra.mxu0 0.0
    %486 = vmatprep.subr.mxu0 0.0
    %487 = vmatpush2.msra.mxu0 0.0
    %488 = vmatprep.subr.mxu0 0.0
    %489 = vmatpush2.msra.mxu0 0.0
    %490 = vmatprep.subr.mxu0 0.0
    %491 = vmatpush2.msra.mxu0 0.0
    %492 = vmatprep.subr.mxu0 0.0
    %493 = vmatpush2.msra.mxu0 0.0
    %494 = vmatprep.subr.mxu0 0.0
    %495 = vmatpush2.msra.mxu0 0.0
    %496 = vmatprep.subr.mxu0 0.0
    %497 = vmatpush2.msra.mxu0 0.0
    %498 = vmatprep.mubr.f32.mxu0 0.0
    %499 = vmatmul.mubr.f32.gmra.mxu0 %v204
    %v500 = vpop.f32.mrf.mxu0
    %v501 = vadd.f32 %v426, %v500
    %v502 = vpop.f32.mrf.mxu0
    %503 = vmatprep.mubr.f32.mxu0 0.0
    %504 = vmatmul.mubr.f32.gmra.mxu0 %v207
    %v505 = vpop.f32.mrf.mxu0
    %v506 = vadd.f32 %v431, %v505
    %v507 = vpop.f32.mrf.mxu0
    %508 = vdwg.mxu0
    %v509 = vmax.f32 %v501, 0.0
    %v510 = vmax.f32 %v506, 0.0
    %v511 = vpack.c.bf16 %v510, %v509
    %v512 = vld [vmem:[#allocation7] sm:$0xf]
    %v513 = vld [vmem:[#allocation7 + $0x4] sm:$0xf]
    %v514 = vld [vmem:[#allocation7 + $0x8] sm:$0xf]
    %v515 = vld [vmem:[#allocation7 + $0xc] sm:$0xf]
    %v516 = vld [vmem:[#allocation7 + $0x10] sm:$0xf]
    %v517 = vld [vmem:[#allocation7 + $0x14] sm:$0xf]
    %v518 = vld [vmem:[#allocation7 + $0x18] sm:$0xf]
    %v519 = vld [vmem:[#allocation7 + $0x1c] sm:$0xf]
    %v520 = vld [vmem:[#allocation7 + $0x20] sm:$0xf]
    %v521 = vld [vmem:[#allocation7 + $0x24] sm:$0xf]
    %v522 = vld [vmem:[#allocation7 + $0x28] sm:$0xf]
    %v523 = vld [vmem:[#allocation7 + $0x2c] sm:$0xf]
    %v524 = vld [vmem:[#allocation7 + $0x30] sm:$0xf]
    %v525 = vld [vmem:[#allocation7 + $0x34] sm:$0xf]
    %v526 = vld [vmem:[#allocation7 + $0x38] sm:$0xf]
    %v527 = vld [vmem:[#allocation7 + $0x3c] sm:$0xf]
    %v528 = vld [vmem:[%s4] sm:$0x1]
    %v530 = vlaneseq
    %v531 = vshrl.u32 %v530, 7
    %v532 = vsub.s32 0, %v531
    %v533 = vrot.slane %v528, %v532
    %v551 = vunpack.c.l.b16 %v512
    %v552 = vunpack.c.l.b16 %v513
    %v553 = vunpack.c.l.b16 %v514
    %v554 = vunpack.c.l.b16 %v515
    %v555 = vunpack.c.l.b16 %v516
    %v556 = vunpack.c.l.b16 %v517
    %v557 = vunpack.c.l.b16 %v518
    %v558 = vunpack.c.l.b16 %v519
    %v559 = vunpack.c.l.b16 %v520
    %v560 = vunpack.c.l.b16 %v521
    %v561 = vunpack.c.l.b16 %v522
    %v562 = vunpack.c.l.b16 %v523
    %v563 = vunpack.c.l.b16 %v524
    %v564 = vunpack.c.l.b16 %v525
    %v565 = vunpack.c.l.b16 %v526
    %v566 = vunpack.c.l.b16 %v527
    %v567 = vpack.c.b16 %v552, %v551
    %v568 = vpack.c.b16 %v554, %v553
    %v569 = vpack.c.b16 %v556, %v555
    %v570 = vpack.c.b16 %v558, %v557
    %v571 = vpack.c.b16 %v560, %v559
    %v572 = vpack.c.b16 %v562, %v561
    %v573 = vpack.c.b16 %v564, %v563
    %v574 = vpack.c.b16 %v566, %v565
    %583 = vmatprep.subr.bf16.mxu0 0
    %584 = vmatpush1.bf16.msra.mxu0 %v574
    %585 = vmatprep.subr.bf16.mxu0 0
    %586 = vmatpush1.bf16.msra.mxu0 %v573
    %587 = vmatprep.subr.bf16.mxu0 0
    %588 = vmatpush1.bf16.msra.mxu0 %v572
    %589 = vmatprep.subr.bf16.mxu0 0
    %590 = vmatpush1.bf16.msra.mxu0 %v571
    %591 = vmatprep.subr.bf16.mxu0 0
    %592 = vmatpush1.bf16.msra.mxu0 %v570
    %593 = vmatprep.subr.bf16.mxu0 0
    %594 = vmatpush1.bf16.msra.mxu0 %v569
    %595 = vmatprep.subr.bf16.mxu0 0
    %596 = vmatpush1.bf16.msra.mxu0 %v568
    %597 = vmatprep.subr.bf16.mxu0 0
    %598 = vmatpush1.bf16.msra.mxu0 %v567
    %599 = vmatprep.subr.bf16.mxu0 0
    %600 = vmatpush2.bf16.msra.mxu0 0
    %601 = vmatprep.subr.bf16.mxu0 0
    %602 = vmatpush2.bf16.msra.mxu0 0
    %603 = vmatprep.subr.bf16.mxu0 0
    %604 = vmatpush2.bf16.msra.mxu0 0
    %605 = vmatprep.subr.bf16.mxu0 0
    %606 = vmatpush2.bf16.msra.mxu0 0
    %607 = vmatprep.subr.bf16.mxu0 0
    %608 = vmatpush2.bf16.msra.mxu0 0
    %609 = vmatprep.subr.bf16.mxu0 0
    %610 = vmatpush2.bf16.msra.mxu0 0
    %611 = vmatprep.subr.bf16.mxu0 0
    %612 = vmatpush2.bf16.msra.mxu0 0
    %613 = vmatprep.subr.bf16.mxu0 0
    %614 = vmatpush2.bf16.msra.mxu0 0
    %615 = vmatprep.mubr.bf16.mxu0 0
    %616 = vmatmul.mubr.bf16.gmra.mxu0 %v511
    %v617 = vpop.f32.mrf.mxu0
    %v618 = vadd.f32 %v533, %v617
    %v619 = vpop.f32.mrf.mxu0
    %v620 = vpop.f32.mrf.mxu0
    %v621 = vadd.f32 %v533, %v620
    %v622 = vpop.f32.mrf.mxu0
    %623 = vdwg.mxu0
    %v624 = vmax.f32 %v618, 0.0
    %v625 = vmax.f32 %v621, 0.0
    %v626 = vpack.c.bf16 %v625, %v624
    %v627 = vld [vmem:[#allocation8] sm:$0xf]
    %v628 = vld [vmem:[#allocation8 + $0x4] sm:$0xf]
    %v629 = vld [vmem:[#allocation8 + $0x8] sm:$0xf]
    %v630 = vld [vmem:[#allocation8 + $0xc] sm:$0xf]
    %v631 = vld [vmem:[#allocation8 + $0x10] sm:$0xf]
    %v632 = vld [vmem:[#allocation8 + $0x14] sm:$0xf]
    %v633 = vld [vmem:[#allocation8 + $0x18] sm:$0xf]
    %v634 = vld [vmem:[#allocation8 + $0x1c] sm:$0xf]
    %v635 = vld [vmem:[#allocation8 + $0x20] sm:$0xf]
    %v636 = vld [vmem:[#allocation8 + $0x24] sm:$0xf]
    %v637 = vld [vmem:[#allocation8 + $0x28] sm:$0xf]
    %v638 = vld [vmem:[#allocation8 + $0x2c] sm:$0xf]
    %v639 = vld [vmem:[#allocation8 + $0x30] sm:$0xf]
    %v640 = vld [vmem:[#allocation8 + $0x34] sm:$0xf]
    %v641 = vld [vmem:[#allocation8 + $0x38] sm:$0xf]
    %v642 = vld [vmem:[#allocation8 + $0x3c] sm:$0xf]
    %v643 = vld [vmem:[%s6] sm:$0x1]
    %v645 = vlaneseq
    %v646 = vshrl.u32 %v645, 7
    %v647 = vsub.s32 0, %v646
    %v648 = vrot.slane %v643, %v647
    %v666 = vunpack.c.l.b16 %v627
    %v667 = vunpack.c.l.b16 %v628
    %v668 = vunpack.c.l.b16 %v629
    %v669 = vunpack.c.l.b16 %v630
    %v670 = vunpack.c.l.b16 %v631
    %v671 = vunpack.c.l.b16 %v632
    %v672 = vunpack.c.l.b16 %v633
    %v673 = vunpack.c.l.b16 %v634
    %v674 = vunpack.c.l.b16 %v635
    %v675 = vunpack.c.l.b16 %v636
    %v676 = vunpack.c.l.b16 %v637
    %v677 = vunpack.c.l.b16 %v638
    %v678 = vunpack.c.l.b16 %v639
    %v679 = vunpack.c.l.b16 %v640
    %v680 = vunpack.c.l.b16 %v641
    %v681 = vunpack.c.l.b16 %v642
    %v682 = vpack.c.b16 %v667, %v666
    %v683 = vpack.c.b16 %v669, %v668
    %v684 = vpack.c.b16 %v671, %v670
    %v685 = vpack.c.b16 %v673, %v672
    %v686 = vpack.c.b16 %v675, %v674
    %v687 = vpack.c.b16 %v677, %v676
    %v688 = vpack.c.b16 %v679, %v678
    %v689 = vpack.c.b16 %v681, %v680
    %698 = vmatprep.subr.bf16.mxu0 0
    %699 = vmatpush1.bf16.msra.mxu0 %v689
    %700 = vmatprep.subr.bf16.mxu0 0
    %701 = vmatpush1.bf16.msra.mxu0 %v688
    %702 = vmatprep.subr.bf16.mxu0 0
    %703 = vmatpush1.bf16.msra.mxu0 %v687
    %704 = vmatprep.subr.bf16.mxu0 0
    %705 = vmatpush1.bf16.msra.mxu0 %v686
    %706 = vmatprep.subr.bf16.mxu0 0
    %707 = vmatpush1.bf16.msra.mxu0 %v685
    %708 = vmatprep.subr.bf16.mxu0 0
    %709 = vmatpush1.bf16.msra.mxu0 %v684
    %710 = vmatprep.subr.bf16.mxu0 0
    %711 = vmatpush1.bf16.msra.mxu0 %v683
    %712 = vmatprep.subr.bf16.mxu0 0
    %713 = vmatpush1.bf16.msra.mxu0 %v682
    %714 = vmatprep.subr.bf16.mxu0 0
    %715 = vmatpush2.bf16.msra.mxu0 0
    %716 = vmatprep.subr.bf16.mxu0 0
    %717 = vmatpush2.bf16.msra.mxu0 0
    %718 = vmatprep.subr.bf16.mxu0 0
    %719 = vmatpush2.bf16.msra.mxu0 0
    %720 = vmatprep.subr.bf16.mxu0 0
    %721 = vmatpush2.bf16.msra.mxu0 0
    %722 = vmatprep.subr.bf16.mxu0 0
    %723 = vmatpush2.bf16.msra.mxu0 0
    %724 = vmatprep.subr.bf16.mxu0 0
    %725 = vmatpush2.bf16.msra.mxu0 0
    %726 = vmatprep.subr.bf16.mxu0 0
    %727 = vmatpush2.bf16.msra.mxu0 0
    %728 = vmatprep.subr.bf16.mxu0 0
    %729 = vmatpush2.bf16.msra.mxu0 0
    %730 = vmatprep.mubr.bf16.mxu0 0
    %731 = vmatmul.mubr.bf16.gmra.mxu0 %v626
    %v732 = vpop.f32.mrf.mxu0
    %v733 = vadd.f32 %v648, %v732
    %v734 = vpop.f32.mrf.mxu0
    %v735 = vpop.f32.mrf.mxu0
    %v736 = vadd.f32 %v648, %v735
    %v737 = vpop.f32.mrf.mxu0
    %738 = vdwg.mxu0
    %v739 = vpack.c.bf16 %v736, %v733
    %v741 = vunpack.c.l.b16 %v739
    %v742 = vunpack.c.h.b16 %v739
    %v743 = vpack.c.b16 %v741, %v741
    %v744 = vpack.c.b16 %v742, %v742
    %747 = vst [vmem:[#allocation10] sm:$0xf] %v743
    %748 = vst [vmem:[#allocation10 + $0x4] sm:$0xf] %v744
    // Predicated region
    $region46: #{tpu_custom_call.1} parent=1 // pred_check
      _
    $region47: #{tpu_custom_call.1} parent=1 // pred_check_branch
      %750 = sbr.rel (0) target = $region49
    $region48: #{tpu_custom_call.1} parent=1 // pred_region
      %s752 = ssub.s32 128, 128
      %753 = vsyncadd [#allocation4], %s752
      %s754 = sshll.u32 [#allocation10], 4
      %s755 = int_to_ptr.vmem [resolvable:$true] %s754
      %760 = dma.vmem_to_hbm [thread:$0]  %s755, 128, %s7, [#allocation4], 64, 64, 4
    $region49: #{tpu_custom_call.1} parent=1 // pred_fallthru
      _
    // Predicated region
    $region50: #{tpu_custom_call.1} parent=1 // pred_check
      _
    $region51: #{tpu_custom_call.1} parent=1 // pred_check_branch
      %762 = sbr.rel (0) target = $region53
    $region52: #{tpu_custom_call.1} parent=1 // pred_region
      %763 = dma.done [#allocation4], 128
    $region53: #{tpu_custom_call.1} parent=1 // pred_fallthru
      _
    %764 = vsyncpa [#allocation3], 1
    %765 = vsyncpa [#allocation6], 1
    %766 = vsyncpa [#allocation9], 1
    %767 = vsyncpa [#allocation4], 1

</llo_original>
